<compile_context>
chip_gen: v7x
topology: tpu7x:2x2x1
jax: 0.10.0
libtpu: 0.0.40
codegen_flags: <defaults>
</compile_context>

<pallas_src>
from functools import partial

import jax
import jax.numpy as jnp
from jax.experimental import pallas as pl
from jax.experimental.pallas import tpu as pltpu


def _silu(y):
    # SiLU = y * sigmoid(y); exp and approx reciprocal both go to the EUP slot.
    return y * pl.reciprocal(1.0 + jnp.exp(-y), approx=True)


# ---------------------------------------------------------------------------
# Fused CSPLayer kernel (one batch element per grid step)
# ---------------------------------------------------------------------------
def _make_csp_kernel(h_sp, w_sp, hidden, use_im2col):
    m_sp = h_sp * w_sp
    taps = [(dy, dx) for dy in (-1, 0, 1) for dx in (-1, 0, 1)]

    def kernel(x_ref, w12_ref, b12_ref, wb1_ref, bb1_ref, wb2_ref, bb2_ref,
               w3a_ref, w3b_ref, b3_ref, mask_ref, o_ref):
        # x: (Cin, M) f32, channels-first, M = H*W on the lane axis.
        x = x_ref[0]

        # conv1 + conv2 fused into one MXU pass: (2*hidden, Cin) @ (Cin, M).
        t12 = jnp.dot(w12_ref[...], x.astype(jnp.bfloat16),
                      preferred_element_type=jnp.float32)
        t12 = _silu(t12 + b12_ref[...])                 # (2*hidden, M) f32
        x1 = t12[:hidden, :]                            # conv1 branch (8-aligned)
        x2 = t12[hidden:, :]                            # conv2 branch

        # Bottleneck conv1 (1x1).
        y = jnp.dot(wb1_ref[...], x1.astype(jnp.bfloat16),
                    preferred_element_type=jnp.float32)
        y = _silu(y + bb1_ref[...])                     # (hidden, M) f32

        # Bottleneck conv2 (3x3, stride 1, pad 1) via lane-axis rolls plus
        # (9, M) border masks broadcast over channels.  No jnp.pad, no
        # sublane-shifted slices.  Rolls/masks stay f32; MXU feed is bf16.
        def tap_value(t):
            dy, dx = taps[t]
            s = dy * w_sp + dx                          # flat source offset
            if s == 0:
                return y                                # centre tap: always valid
            r = pltpu.roll(y, (-s) % m_sp, 1)           # r[:, m] == y[:, m + s]
            return r * mask_ref[t:t + 1, :]             # zero out-of-image taps

        if use_im2col:
            # Small shapes: bf16 im2col, single K=9*hidden MXU matmul.
            cols = [tap_value(t).astype(jnp.bfloat16) for t in range(9)]
            im2col = jnp.concatenate(cols, axis=0)      # (9*hidden, M) bf16
            z = jnp.dot(wb2_ref[...], im2col,
                        preferred_element_type=jnp.float32)
        else:
            # Production shapes (and v7x): nine accumulated K=hidden dots;
            # only one (hidden, M) tap is ever materialized.
            z = jnp.zeros((hidden, m_sp), jnp.float32)
            for t in range(9):
                z = z + jnp.dot(wb2_ref[t], tap_value(t).astype(jnp.bfloat16),
                                preferred_element_type=jnp.float32)

        z = _silu(z + bb2_ref[...]) + x1                # SiLU, then shortcut add

        # Channel concat fused into conv3 as two accumulated matmuls.
        out = (jnp.dot(w3a_ref[...], z.astype(jnp.bfloat16),
                       preferred_element_type=jnp.float32) +
               jnp.dot(w3b_ref[...], x2.astype(jnp.bfloat16),
                       preferred_element_type=jnp.float32))
        o_ref[0] = _silu(out + b3_ref[...]).astype(o_ref.dtype)

    return kernel


def _make_tap_masks(h_sp, w_sp):
    """(9, H*W) f32 validity masks for the 3x3 taps (padding=1)."""
    hh = jnp.repeat(jnp.arange(h_sp), w_sp)             # row index per flat pos
    ww = jnp.tile(jnp.arange(w_sp), h_sp)               # col index per flat pos
    rows = []
    for dy in (-1, 0, 1):
        for dx in (-1, 0, 1):
            rows.append((hh + dy >= 0) & (hh + dy < h_sp) &
                        (ww + dx >= 0) & (ww + dx < w_sp))
    return jnp.stack(rows, axis=0).astype(jnp.float32)  # (9, M)


def _vmem_limit_bytes(c, hidden, cout, m, use_im2col):
    """Rough per-grid-step working-set estimate -> explicit scoped-VMEM limit."""
    f32, bf16 = 4, 2
    x_blk, o_blk = c * m * f32, cout * m * f32
    inter = ((2 * hidden) * m * f32          # t12
             + hidden * m * (f32 + bf16)     # y (+ one bf16 tap)
             + hidden * m * f32              # z accumulator
             + cout * m * f32)               # conv3 accumulator
    if use_im2col:
        inter += 2 * 9 * hidden * m * bf16   # bf16 im2col (cols + concat)
    weights = (2 * hidden * c + hidden * hidden + 9 * hidden * hidden
               + 2 * cout * hidden) * bf16 + 9 * m * f32
    est = 2 * (x_blk + o_blk) + inter + 2 * weights + (4 << 20)
    return int(min(max(est, 32 << 20), 64 << 20))       # stay under v7x physical


@partial(jax.jit, static_argnames=("force_small_path",))
def csp_layer_forward(x_nchw, kp, force_small_path=None):
    """CSPLayer forward (n=1 bottleneck, shortcut=True, depthwise=False)."""
    n, c, h_sp, w_sp = x_nchw.shape
    m = h_sp * w_sp
    hidden = kp["bb1"].shape[0]
    cout = kp["b3"].shape[0]
    assert m % 128 == 0 and c % 8 == 0 and hidden % 8 == 0 and cout % 8 == 0

    # Static path selection: single im2col matmul only when it is tiny.
    use_im2col = (hidden <= 32) and (9 * hidden * m * 2 <= (2 << 20))
    if force_small_path is not None:
        use_im2col = bool(force_small_path)

    x2d = x_nchw.reshape(n, c, m)                       # free reshape, no transpose
    masks = _make_tap_masks(h_sp, w_sp)                 # (9, M) f32
    wb2 = kp["wb2_flat"] if use_im2col else kp["wb2_taps"]
    kernel = _make_csp_kernel(h_sp, w_sp, hidden, use_im2col)

    operands = [x2d, kp["w12"], kp["b12"], kp["wb1"], kp["bb1"], wb2,
                kp["bb2"], kp["w3a"], kp["w3b"], kp["b3"], masks]

    def _const_spec(a):
        # Constant index_map -> weights/biases/masks stay resident in VMEM.
        return pl.BlockSpec(a.shape, lambda i, _nd=a.ndim: (0,) * _nd)

    out = pl.pallas_call(
        kernel,
        out_shape=jax.ShapeDtypeStruct((n, cout, m), x_nchw.dtype),
        grid=(n,),
        in_specs=[pl.BlockSpec((1, c, m), lambda i: (i, 0, 0))]
                 + [_const_spec(a) for a in operands[1:]],
        out_specs=pl.BlockSpec((1, cout, m), lambda i: (i, 0, 0)),
        compiler_params=pltpu.CompilerParams(
            dimension_semantics=("parallel",),
            vmem_limit_bytes=_vmem_limit_bytes(c, hidden, cout, m, use_im2col)),
    )(*operands)
    return out.reshape(n, cout, h_sp, w_sp)


# ---------------------------------------------------------------------------
# Parameter construction (deterministic) + BN folding into kernel format
# ---------------------------------------------------------------------------
def make_baseconv_raw(key, cin, cout, ksize):
    """Random Conv2d(k,k,bias=False) + BatchNorm2d(eval) parameters (HWIO)."""
    k1, k2, k3, k4, k5 = jax.random.split(key, 5)
    return dict(
        w=0.1 * jax.random.normal(k1, (ksize, ksize, cin, cout), jnp.float32),
        gamma=1.0 + 0.1 * jax.random.normal(k2, (cout,), jnp.float32),
        beta=0.1 * jax.random.normal(k3, (cout,), jnp.float32),
        mean=0.1 * jax.random.normal(k4, (cout,), jnp.float32),
        var=1.0 + 0.1 * jnp.abs(jax.random.normal(k5, (cout,), jnp.float32)),
    )


def _fold_bn(p, eps=1e-5):
    """Fold BN into the conv; return scaled HWIO weights and (Cout, 1) bias."""
    cout = p["w"].shape[3]
    scale = p["gamma"] / jnp.sqrt(p["var"] + eps)
    wf = p["w"] * scale                                  # scale over Cout (last dim)
    bias = (p["beta"] - p["mean"] * scale).reshape(cout, 1).astype(jnp.float32)
    return wf, bias


def _as_mat(wf):
    """(1,1,Cin,Cout) folded weight -> (Cout, Cin) bf16 for a 1x1 conv matmul."""
    _, _, cin, cout = wf.shape
    return wf.reshape(cin, cout).T.astype(jnp.bfloat16)


def make_csp_raw_params(key, in_channels, out_channels, expansion=0.5):
    hidden = int(out_channels * expansion)
    keys = jax.random.split(key, 5)
    return dict(
        conv1=make_baseconv_raw(keys[0], in_channels, hidden, 1),
        conv2=make_baseconv_raw(keys[1], in_channels, hidden, 1),
        conv3=make_baseconv_raw(keys[2], 2 * hidden, out_channels, 1),
        # Bottleneck(hidden, hidden, shortcut=True, expansion=1.0)
        b_conv1=make_baseconv_raw(keys[3], hidden, hidden, 1),
        b_conv2=make_baseconv_raw(keys[4], hidden, hidden, 3),
    )


def make_csp_kernel_params(raw):
    w1f, b1 = _fold_bn(raw["conv1"])
    w2f, b2 = _fold_bn(raw["conv2"])
    wb1f, bb1 = _fold_bn(raw["b_conv1"])
    wb2f, bb2 = _fold_bn(raw["b_conv2"])
    w3f, b3 = _fold_bn(raw["conv3"])

    w1, w2, wb1, w3 = _as_mat(w1f), _as_mat(w2f), _as_mat(wb1f), _as_mat(w3f)
    hidden = w1.shape[0]

    # 3x3 weights in both formats: per-tap (9, Cout, Cin) and flat (Cout, 9*Cin),
    # tap-major / cin-minor to match the in-kernel roll/tap order.
    _, _, cin3, cout3 = wb2f.shape
    wb2_taps = wb2f.reshape(9, cin3, cout3).transpose(0, 2, 1).astype(jnp.bfloat16)
    wb2_flat = wb2_taps.transpose(1, 0, 2).reshape(cout3, 9 * cin3)

    return dict(
        w12=jnp.concatenate([w1, w2], axis=0),           # conv1 rows, then conv2
        b12=jnp.concatenate([b1, b2], axis=0),
        wb1=wb1, bb1=bb1,
        wb2_taps=wb2_taps, wb2_flat=wb2_flat, bb2=bb2,
        w3a=w3[:, :hidden],                              # multiplies bottleneck output
        w3b=w3[:, hidden:],                              # multiplies conv2 branch
        b3=b3,
    )


# ---------------------------------------------------------------------------
# Pure-JAX f32 reference (matches the PyTorch CSPLayer semantics)
# ---------------------------------------------------------------------------
def _baseconv_ref(x, p, eps=1e-5):
    pad = (p["w"].shape[0] - 1) // 2
    y = jax.lax.conv_general_dilated(
        x, p["w"], window_strides=(1, 1), padding=[(pad, pad), (pad, pad)],
        dimension_numbers=("NCHW", "HWIO", "NCHW"))
    scale = p["gamma"] / jnp.sqrt(p["var"] + eps)
    bias = p["beta"] - p["mean"] * scale
    y = y * scale[None, :, None, None] + bias[None, :, None, None]
    return y * jax.nn.sigmoid(y)


def csp_layer_reference(x, raw):
    x1 = _baseconv_ref(x, raw["conv1"])
    x2 = _baseconv_ref(x, raw["conv2"])
    y = _baseconv_ref(x1, raw["b_conv1"])
    y = _baseconv_ref(y, raw["b_conv2"])
    x1 = y + x1                                          # Bottleneck shortcut
    cat = jnp.concatenate([x1, x2], axis=1)
    return _baseconv_ref(cat, raw["conv3"])


if __name__ == "__main__":
    key = jax.random.PRNGKey(0)
    k_x, k_p = jax.random.split(key)

    N, C, H, W = 2, 16, 16, 16                           # in_channels = out_channels = 16
    x = jax.random.normal(k_x, (N, C, H, W), jnp.float32)

    raw = make_csp_raw_params(k_p, C, C, expansion=0.5)  # hidden = 8
    kparams = make_csp_kernel_params(raw)
    ref = csp_layer_reference(x, raw)

    # Path A (auto-selected at these small shapes): bf16 im2col, one K=9*hidden dot.
    out_a = csp_layer_forward(x, kparams)
    jax.block_until_ready(out_a)
    assert out_a.shape == (N, C, H, W), out_a.shape
    err_a = float(jnp.max(jnp.abs(out_a - ref)))
    assert err_a < 5e-2, f"im2col path mismatch vs f32 reference: {err_a}"

    # Path B (production / v7x form): nine accumulated K=hidden dots, no im2col.
    out_b = csp_layer_forward(x, kparams, force_small_path=False)
    jax.block_until_ready(out_b)
    err_b = float(jnp.max(jnp.abs(out_b - ref)))
    assert err_b < 5e-2, f"9-dot path mismatch vs f32 reference: {err_b}"

    print("KERNEL_OK")
</pallas_src>

<mosaic_0001>
module attributes {stable_mosaic.version = 11 : i64} {
  func.func @kernel(%arg0: i32, %arg1: memref<1x16x256xf32, #tpu.memory_space<vmem>>, %arg2: memref<16x16xbf16, #tpu.memory_space<vmem>>, %arg3: memref<16x1xf32, #tpu.memory_space<vmem>>, %arg4: memref<8x8xbf16, #tpu.memory_space<vmem>>, %arg5: memref<8x1xf32, #tpu.memory_space<vmem>>, %arg6: memref<8x72xbf16, #tpu.memory_space<vmem>>, %arg7: memref<8x1xf32, #tpu.memory_space<vmem>>, %arg8: memref<16x8xbf16, #tpu.memory_space<vmem>>, %arg9: memref<16x8xbf16, #tpu.memory_space<vmem>>, %arg10: memref<16x1xf32, #tpu.memory_space<vmem>>, %arg11: memref<9x256xf32, #tpu.memory_space<vmem>>, %arg12: memref<1x16x256xf32, #tpu.memory_space<vmem>>) attributes {dimension_semantics = [#tpu.dimension_semantics<parallel>], iteration_bounds = array<i64: 2>, scalar_prefetch = 0 : i64, scratch_operands = 0 : i64, tpu.core_type = #tpu.core_type<tc>, window_params = [{transform_indices = @transform_0, window_bounds = array<i64: 1, 16, 256>}, {pipeline_mode = #tpu.pipeline_mode<synchronous>, transform_indices = @transform_1, window_bounds = array<i64: 16, 16>}, {pipeline_mode = #tpu.pipeline_mode<synchronous>, transform_indices = @transform_2, window_bounds = array<i64: 16, 1>}, {pipeline_mode = #tpu.pipeline_mode<synchronous>, transform_indices = @transform_3, window_bounds = array<i64: 8, 8>}, {pipeline_mode = #tpu.pipeline_mode<synchronous>, transform_indices = @transform_4, window_bounds = array<i64: 8, 1>}, {pipeline_mode = #tpu.pipeline_mode<synchronous>, transform_indices = @transform_5, window_bounds = array<i64: 8, 72>}, {pipeline_mode = #tpu.pipeline_mode<synchronous>, transform_indices = @transform_6, window_bounds = array<i64: 8, 1>}, {pipeline_mode = #tpu.pipeline_mode<synchronous>, transform_indices = @transform_7, window_bounds = array<i64: 16, 8>}, {pipeline_mode = #tpu.pipeline_mode<synchronous>, transform_indices = @transform_8, window_bounds = array<i64: 16, 8>}, {pipeline_mode = #tpu.pipeline_mode<synchronous>, transform_indices = @transform_9, window_bounds = array<i64: 16, 1>}, {pipeline_mode = #tpu.pipeline_mode<synchronous>, transform_indices = @transform_10, window_bounds = array<i64: 9, 256>}, {transform_indices = @transform_11, window_bounds = array<i64: 1, 16, 256>}]} {
    %c0 = arith.constant 0 : index
    %c0_0 = arith.constant 0 : index
    %c0_1 = arith.constant 0 : index
    %0 = vector.load %arg1[%c0, %c0_0, %c0_1] : memref<1x16x256xf32, #tpu.memory_space<vmem>>, vector<1x16x256xf32>
    %1 = vector.shape_cast %0 : vector<1x16x256xf32> to vector<16x256xf32>
    %c0_2 = arith.constant 0 : index
    %c0_3 = arith.constant 0 : index
    %2 = vector.load %arg2[%c0_2, %c0_3] : memref<16x16xbf16, #tpu.memory_space<vmem>>, vector<16x16xbf16>
    %3 = arith.truncf %1 : vector<16x256xf32> to vector<16x256xbf16>
    %cst = arith.constant dense<0.000000e+00> : vector<16x256xf32>
    %4 = tpu.matmul %2, %3, %cst {dimension_numbers = #tpu.dot_dimension_numbers<[1], [0], [0], [1], [0, 0, 1, 1], [], []>} : vector<16x16xbf16>, vector<16x256xbf16>, vector<16x256xf32> -> vector<16x256xf32>
    %c0_4 = arith.constant 0 : index
    %c0_5 = arith.constant 0 : index
    %5 = vector.load %arg3[%c0_4, %c0_5] : memref<16x1xf32, #tpu.memory_space<vmem>>, vector<16x1xf32>
    %6 = vector.broadcast %5 : vector<16x1xf32> to vector<16x256xf32>
    %7 = arith.addf %4, %6 : vector<16x256xf32>
    %cst_6 = arith.constant 0.000000e+00 : f32
    %8 = vector.broadcast %cst_6 : f32 to vector<16x256xf32>
    %9 = arith.subf %8, %7 : vector<16x256xf32>
    %10 = math.exp %9 : vector<16x256xf32>
    %cst_7 = arith.constant 1.000000e+00 : f32
    %11 = vector.broadcast %cst_7 : f32 to vector<16x256xf32>
    %12 = arith.addf %11, %10 : vector<16x256xf32>
    %13 = tpu.reciprocal %12 {approx = true} : vector<16x256xf32> -> vector<16x256xf32>
    %14 = arith.mulf %7, %13 : vector<16x256xf32>
    %15 = vector.extract_strided_slice %14 {offsets = [0, 0], sizes = [8, 256], strides = [1, 1]} : vector<16x256xf32> to vector<8x256xf32>
    %16 = vector.extract_strided_slice %14 {offsets = [8, 0], sizes = [8, 256], strides = [1, 1]} : vector<16x256xf32> to vector<8x256xf32>
    %c0_8 = arith.constant 0 : index
    %c0_9 = arith.constant 0 : index
    %17 = vector.load %arg4[%c0_8, %c0_9] : memref<8x8xbf16, #tpu.memory_space<vmem>>, vector<8x8xbf16>
    %18 = arith.truncf %15 : vector<8x256xf32> to vector<8x256xbf16>
    %cst_10 = arith.constant dense<0.000000e+00> : vector<8x256xf32>
    %19 = tpu.matmul %17, %18, %cst_10 {dimension_numbers = #tpu.dot_dimension_numbers<[1], [0], [0], [1], [0, 0, 1, 1], [], []>} : vector<8x8xbf16>, vector<8x256xbf16>, vector<8x256xf32> -> vector<8x256xf32>
    %c0_11 = arith.constant 0 : index
    %c0_12 = arith.constant 0 : index
    %20 = vector.load %arg5[%c0_11, %c0_12] : memref<8x1xf32, #tpu.memory_space<vmem>>, vector<8x1xf32>
    %21 = vector.broadcast %20 : vector<8x1xf32> to vector<8x256xf32>
    %22 = arith.addf %19, %21 : vector<8x256xf32>
    %cst_13 = arith.constant 0.000000e+00 : f32
    %23 = vector.broadcast %cst_13 : f32 to vector<8x256xf32>
    %24 = arith.subf %23, %22 : vector<8x256xf32>
    %25 = math.exp %24 : vector<8x256xf32>
    %cst_14 = arith.constant 1.000000e+00 : f32
    %26 = vector.broadcast %cst_14 : f32 to vector<8x256xf32>
    %27 = arith.addf %26, %25 : vector<8x256xf32>
    %28 = tpu.reciprocal %27 {approx = true} : vector<8x256xf32> -> vector<8x256xf32>
    %29 = arith.mulf %22, %28 : vector<8x256xf32>
    %c17_i32 = arith.constant 17 : i32
    %30 = tpu.dynamic_rotate %29 by %c17_i32 dim 1 : vector<8x256xf32>, i32 -> vector<8x256xf32>
    %c0_15 = arith.constant 0 : index
    %c0_16 = arith.constant 0 : index
    %31 = vector.load %arg11[%c0_15, %c0_16] : memref<9x256xf32, #tpu.memory_space<vmem>>, vector<1x256xf32>
    %32 = vector.broadcast %31 : vector<1x256xf32> to vector<8x256xf32>
    %33 = arith.mulf %30, %32 : vector<8x256xf32>
    %34 = arith.truncf %33 : vector<8x256xf32> to vector<8x256xbf16>
    %c16_i32 = arith.constant 16 : i32
    %35 = tpu.dynamic_rotate %29 by %c16_i32 dim 1 : vector<8x256xf32>, i32 -> vector<8x256xf32>
    %c1 = arith.constant 1 : index
    %c0_17 = arith.constant 0 : index
    %36 = vector.load %arg11[%c1, %c0_17] : memref<9x256xf32, #tpu.memory_space<vmem>>, vector<1x256xf32>
    %37 = vector.broadcast %36 : vector<1x256xf32> to vector<8x256xf32>
    %38 = arith.mulf %35, %37 : vector<8x256xf32>
    %39 = arith.truncf %38 : vector<8x256xf32> to vector<8x256xbf16>
    %c15_i32 = arith.constant 15 : i32
    %40 = tpu.dynamic_rotate %29 by %c15_i32 dim 1 : vector<8x256xf32>, i32 -> vector<8x256xf32>
    %c2 = arith.constant 2 : index
    %c0_18 = arith.constant 0 : index
    %41 = vector.load %arg11[%c2, %c0_18] : memref<9x256xf32, #tpu.memory_space<vmem>>, vector<1x256xf32>
    %42 = vector.broadcast %41 : vector<1x256xf32> to vector<8x256xf32>
    %43 = arith.mulf %40, %42 : vector<8x256xf32>
    %44 = arith.truncf %43 : vector<8x256xf32> to vector<8x256xbf16>
    %c1_i32 = arith.constant 1 : i32
    %45 = tpu.dynamic_rotate %29 by %c1_i32 dim 1 : vector<8x256xf32>, i32 -> vector<8x256xf32>
    %c3 = arith.constant 3 : index
    %c0_19 = arith.constant 0 : index
    %46 = vector.load %arg11[%c3, %c0_19] : memref<9x256xf32, #tpu.memory_space<vmem>>, vector<1x256xf32>
    %47 = vector.broadcast %46 : vector<1x256xf32> to vector<8x256xf32>
    %48 = arith.mulf %45, %47 : vector<8x256xf32>
    %49 = arith.truncf %48 : vector<8x256xf32> to vector<8x256xbf16>
    %50 = arith.truncf %29 : vector<8x256xf32> to vector<8x256xbf16>
    %c255_i32 = arith.constant 255 : i32
    %51 = tpu.dynamic_rotate %29 by %c255_i32 dim 1 : vector<8x256xf32>, i32 -> vector<8x256xf32>
    %c5 = arith.constant 5 : index
    %c0_20 = arith.constant 0 : index
    %52 = vector.load %arg11[%c5, %c0_20] : memref<9x256xf32, #tpu.memory_space<vmem>>, vector<1x256xf32>
    %53 = vector.broadcast %52 : vector<1x256xf32> to vector<8x256xf32>
    %54 = arith.mulf %51, %53 : vector<8x256xf32>
    %55 = arith.truncf %54 : vector<8x256xf32> to vector<8x256xbf16>
    %c241_i32 = arith.constant 241 : i32
    %56 = tpu.dynamic_rotate %29 by %c241_i32 dim 1 : vector<8x256xf32>, i32 -> vector<8x256xf32>
    %c6 = arith.constant 6 : index
    %c0_21 = arith.constant 0 : index
    %57 = vector.load %arg11[%c6, %c0_21] : memref<9x256xf32, #tpu.memory_space<vmem>>, vector<1x256xf32>
    %58 = vector.broadcast %57 : vector<1x256xf32> to vector<8x256xf32>
    %59 = arith.mulf %56, %58 : vector<8x256xf32>
    %60 = arith.truncf %59 : vector<8x256xf32> to vector<8x256xbf16>
    %c240_i32 = arith.constant 240 : i32
    %61 = tpu.dynamic_rotate %29 by %c240_i32 dim 1 : vector<8x256xf32>, i32 -> vector<8x256xf32>
    %c7 = arith.constant 7 : index
    %c0_22 = arith.constant 0 : index
    %62 = vector.load %arg11[%c7, %c0_22] : memref<9x256xf32, #tpu.memory_space<vmem>>, vector<1x256xf32>
    %63 = vector.broadcast %62 : vector<1x256xf32> to vector<8x256xf32>
    %64 = arith.mulf %61, %63 : vector<8x256xf32>
    %65 = arith.truncf %64 : vector<8x256xf32> to vector<8x256xbf16>
    %c239_i32 = arith.constant 239 : i32
    %66 = tpu.dynamic_rotate %29 by %c239_i32 dim 1 : vector<8x256xf32>, i32 -> vector<8x256xf32>
    %c8 = arith.constant 8 : index
    %c0_23 = arith.constant 0 : index
    %67 = vector.load %arg11[%c8, %c0_23] : memref<9x256xf32, #tpu.memory_space<vmem>>, vector<1x256xf32>
    %68 = vector.broadcast %67 : vector<1x256xf32> to vector<8x256xf32>
    %69 = arith.mulf %66, %68 : vector<8x256xf32>
    %70 = arith.truncf %69 : vector<8x256xf32> to vector<8x256xbf16>
    %71 = tpu.concatenate %34, %39, %44, %49, %50, %55, %60, %65, %70 in 0 : vector<8x256xbf16>, vector<8x256xbf16>, vector<8x256xbf16>, vector<8x256xbf16>, vector<8x256xbf16>, vector<8x256xbf16>, vector<8x256xbf16>, vector<8x256xbf16>, vector<8x256xbf16> -> vector<72x256xbf16>
    %c0_24 = arith.constant 0 : index
    %c0_25 = arith.constant 0 : index
    %72 = vector.load %arg6[%c0_24, %c0_25] : memref<8x72xbf16, #tpu.memory_space<vmem>>, vector<8x72xbf16>
    %cst_26 = arith.constant dense<0.000000e+00> : vector<8x256xf32>
    %73 = tpu.matmul %72, %71, %cst_26 {dimension_numbers = #tpu.dot_dimension_numbers<[1], [0], [0], [1], [0, 0, 1, 1], [], []>} : vector<8x72xbf16>, vector<72x256xbf16>, vector<8x256xf32> -> vector<8x256xf32>
    %c0_27 = arith.constant 0 : index
    %c0_28 = arith.constant 0 : index
    %74 = vector.load %arg7[%c0_27, %c0_28] : memref<8x1xf32, #tpu.memory_space<vmem>>, vector<8x1xf32>
    %75 = vector.broadcast %74 : vector<8x1xf32> to vector<8x256xf32>
    %76 = arith.addf %73, %75 : vector<8x256xf32>
    %cst_29 = arith.constant 0.000000e+00 : f32
    %77 = vector.broadcast %cst_29 : f32 to vector<8x256xf32>
    %78 = arith.subf %77, %76 : vector<8x256xf32>
    %79 = math.exp %78 : vector<8x256xf32>
    %cst_30 = arith.constant 1.000000e+00 : f32
    %80 = vector.broadcast %cst_30 : f32 to vector<8x256xf32>
    %81 = arith.addf %80, %79 : vector<8x256xf32>
    %82 = tpu.reciprocal %81 {approx = true} : vector<8x256xf32> -> vector<8x256xf32>
    %83 = arith.mulf %76, %82 : vector<8x256xf32>
    %84 = arith.addf %83, %15 : vector<8x256xf32>
    %c0_31 = arith.constant 0 : index
    %c0_32 = arith.constant 0 : index
    %85 = vector.load %arg8[%c0_31, %c0_32] : memref<16x8xbf16, #tpu.memory_space<vmem>>, vector<16x8xbf16>
    %86 = arith.truncf %84 : vector<8x256xf32> to vector<8x256xbf16>
    %cst_33 = arith.constant dense<0.000000e+00> : vector<16x256xf32>
    %87 = tpu.matmul %85, %86, %cst_33 {dimension_numbers = #tpu.dot_dimension_numbers<[1], [0], [0], [1], [0, 0, 1, 1], [], []>} : vector<16x8xbf16>, vector<8x256xbf16>, vector<16x256xf32> -> vector<16x256xf32>
    %c0_34 = arith.constant 0 : index
    %c0_35 = arith.constant 0 : index
    %88 = vector.load %arg9[%c0_34, %c0_35] : memref<16x8xbf16, #tpu.memory_space<vmem>>, vector<16x8xbf16>
    %89 = arith.truncf %16 : vector<8x256xf32> to vector<8x256xbf16>
    %cst_36 = arith.constant dense<0.000000e+00> : vector<16x256xf32>
    %90 = tpu.matmul %88, %89, %cst_36 {dimension_numbers = #tpu.dot_dimension_numbers<[1], [0], [0], [1], [0, 0, 1, 1], [], []>} : vector<16x8xbf16>, vector<8x256xbf16>, vector<16x256xf32> -> vector<16x256xf32>
    %91 = arith.addf %87, %90 : vector<16x256xf32>
    %c0_37 = arith.constant 0 : index
    %c0_38 = arith.constant 0 : index
    %92 = vector.load %arg10[%c0_37, %c0_38] : memref<16x1xf32, #tpu.memory_space<vmem>>, vector<16x1xf32>
    %93 = vector.broadcast %92 : vector<16x1xf32> to vector<16x256xf32>
    %94 = arith.addf %91, %93 : vector<16x256xf32>
    %cst_39 = arith.constant 0.000000e+00 : f32
    %95 = vector.broadcast %cst_39 : f32 to vector<16x256xf32>
    %96 = arith.subf %95, %94 : vector<16x256xf32>
    %97 = math.exp %96 : vector<16x256xf32>
    %cst_40 = arith.constant 1.000000e+00 : f32
    %98 = vector.broadcast %cst_40 : f32 to vector<16x256xf32>
    %99 = arith.addf %98, %97 : vector<16x256xf32>
    %100 = tpu.reciprocal %99 {approx = true} : vector<16x256xf32> -> vector<16x256xf32>
    %101 = arith.mulf %94, %100 : vector<16x256xf32>
    %c0_41 = arith.constant 0 : index
    %c0_42 = arith.constant 0 : index
    %c0_43 = arith.constant 0 : index
    %102 = vector.load %arg12[%c0_41, %c0_42, %c0_43] : memref<1x16x256xf32, #tpu.memory_space<vmem>>, vector<1x16x256xf32>
    %103 = vector.shape_cast %102 : vector<1x16x256xf32> to vector<16x256xf32>
    %104 = vector.shape_cast %101 : vector<16x256xf32> to vector<1x16x256xf32>
    tpu.vector_store %arg12[%c0_41, %c0_42, %c0_43], %104 {strides = array<i32>} : memref<1x16x256xf32, #tpu.memory_space<vmem>>, vector<1x16x256xf32>,
    return
  }
  func.func @transform_0(%arg0: i32) -> (i32, i32, i32) {
    %c0_i32 = arith.constant 0 : i32
    %c0_i32_0 = arith.constant 0 : i32
    %c0_i32_1 = arith.constant 0 : i32
    return %arg0, %c0_i32, %c0_i32_0 : i32, i32, i32
  }
  func.func @transform_1(%arg0: i32) -> (i32, i32) {
    %c0_i32 = arith.constant 0 : i32
    %c0_i32_0 = arith.constant 0 : i32
    %c0_i32_1 = arith.constant 0 : i32
    return %c0_i32, %c0_i32_0 : i32, i32
  }
  func.func @transform_2(%arg0: i32) -> (i32, i32) {
    %c0_i32 = arith.constant 0 : i32
    %c0_i32_0 = arith.constant 0 : i32
    %c0_i32_1 = arith.constant 0 : i32
    return %c0_i32, %c0_i32_0 : i32, i32
  }
  func.func @transform_3(%arg0: i32) -> (i32, i32) {
    %c0_i32 = arith.constant 0 : i32
    %c0_i32_0 = arith.constant 0 : i32
    %c0_i32_1 = arith.constant 0 : i32
    return %c0_i32, %c0_i32_0 : i32, i32
  }
  func.func @transform_4(%arg0: i32) -> (i32, i32) {
    %c0_i32 = arith.constant 0 : i32
    %c0_i32_0 = arith.constant 0 : i32
    %c0_i32_1 = arith.constant 0 : i32
    return %c0_i32, %c0_i32_0 : i32, i32
  }
  func.func @transform_5(%arg0: i32) -> (i32, i32) {
    %c0_i32 = arith.constant 0 : i32
    %c0_i32_0 = arith.constant 0 : i32
    %c0_i32_1 = arith.constant 0 : i32
    return %c0_i32, %c0_i32_0 : i32, i32
  }
  func.func @transform_6(%arg0: i32) -> (i32, i32) {
    %c0_i32 = arith.constant 0 : i32
    %c0_i32_0 = arith.constant 0 : i32
    %c0_i32_1 = arith.constant 0 : i32
    return %c0_i32, %c0_i32_0 : i32, i32
  }
  func.func @transform_7(%arg0: i32) -> (i32, i32) {
    %c0_i32 = arith.constant 0 : i32
    %c0_i32_0 = arith.constant 0 : i32
    %c0_i32_1 = arith.constant 0 : i32
    return %c0_i32, %c0_i32_0 : i32, i32
  }
  func.func @transform_8(%arg0: i32) -> (i32, i32) {
    %c0_i32 = arith.constant 0 : i32
    %c0_i32_0 = arith.constant 0 : i32
    %c0_i32_1 = arith.constant 0 : i32
    return %c0_i32, %c0_i32_0 : i32, i32
  }
  func.func @transform_9(%arg0: i32) -> (i32, i32) {
    %c0_i32 = arith.constant 0 : i32
    %c0_i32_0 = arith.constant 0 : i32
    %c0_i32_1 = arith.constant 0 : i32
    return %c0_i32, %c0_i32_0 : i32, i32
  }
  func.func @transform_10(%arg0: i32) -> (i32, i32) {
    %c0_i32 = arith.constant 0 : i32
    %c0_i32_0 = arith.constant 0 : i32
    %c0_i32_1 = arith.constant 0 : i32
    return %c0_i32, %c0_i32_0 : i32, i32
  }
  func.func @transform_11(%arg0: i32) -> (i32, i32, i32) {
    %c0_i32 = arith.constant 0 : i32
    %c0_i32_0 = arith.constant 0 : i32
    %c0_i32_1 = arith.constant 0 : i32
    return %arg0, %c0_i32, %c0_i32_0 : i32, i32, i32
  }
}

</mosaic_0001>

<llo_original>
// kernel: csp_layer_forward.1
$region0: #{csp_layer_forward.1}
  #allocation0 [shape = 'u32[]', space=smem, size = 0x4, offset = 0x4, fixed_abs, tag = 'smem constant byte address 0x4 - core index']
  #allocation1 [shape = 'u32[144,128]{1,0:T(1,128)}', space=vmem, size = 0x12000, scoped, tag = 'internal scratch']
  %s0 = inlined_call_operand.vmem [shape: f32[2,16,256], index: 0, kind: input, shape index: {}]
  %s1 = inlined_call_operand.vmem [shape: bf16[16,16], index: 1, kind: input, shape index: {}]
  %s2 = inlined_call_operand.vmem [shape: f32[16,1], index: 2, kind: input, shape index: {}]
  %s3 = inlined_call_operand.vmem [shape: bf16[8,8], index: 3, kind: input, shape index: {}]
  %s4 = inlined_call_operand.vmem [shape: f32[8,1], index: 4, kind: input, shape index: {}]
  %s5 = inlined_call_operand.vmem [shape: bf16[8,72], index: 5, kind: input, shape index: {}]
  %s6 = inlined_call_operand.vmem [shape: f32[8,1], index: 6, kind: input, shape index: {}]
  %s7 = inlined_call_operand.vmem [shape: bf16[16,8], index: 7, kind: input, shape index: {}]
  %s8 = inlined_call_operand.vmem [shape: bf16[16,8], index: 8, kind: input, shape index: {}]
  %s9 = inlined_call_operand.vmem [shape: f32[16,1], index: 9, kind: input, shape index: {}]
  %s10 = inlined_call_operand.vmem [shape: f32[9,256], index: 10, kind: input, shape index: {}]
  %s11 = inlined_call_operand.vmem [shape: f32[2,16,256], index: 11, kind: output, shape index: {}]
  %s12 = sld [smem:[#allocation0]]
  $region77: #{csp_layer_forward.1} parent=0
    _
  %s14 = ssub.s32 1, %s12
  %s15 = scalar_select 0, %s14, %s12
  loop: start=0, step=1, limit=4
  $region2: #{csp_layer_forward.1} parent=0 // loop_pre_header
    _
  $region3: #{csp_layer_forward.1} parent=0 // loop_header
    %s17 = sphi 0, %s21
    %p18 = scmp.ge.s32.totalorder %s17, 4
    %s27 = sphi 0, %s29
    %s30 = sphi 0, %s27
    %s31 = sphi 0, %s30
    %s47 = sphi 0, %s31
    %s51 = sphi 0, %s51
    %s53 = sphi 0, %s51
    %s54 = sphi 0, %s53
    %s68 = sphi 0, %s54
    %s72 = sphi 0, %s72
    %s74 = sphi 0, %s72
    %s75 = sphi 0, %s74
    %s89 = sphi 0, %s75
    %s93 = sphi 0, %s93
    %s95 = sphi 0, %s93
    %s96 = sphi 0, %s95
    %s110 = sphi 0, %s96
    %s114 = sphi 0, %s114
    %s116 = sphi 0, %s114
    %s117 = sphi 0, %s116
    %s131 = sphi 0, %s117
    %s135 = sphi 0, %s135
    %s137 = sphi 0, %s135
    %s138 = sphi 0, %s137
    %s152 = sphi 0, %s138
    %s156 = sphi 0, %s156
    %s158 = sphi 0, %s156
    %s159 = sphi 0, %s158
    %s173 = sphi 0, %s159
    %s177 = sphi 0, %s177
    %s179 = sphi 0, %s177
    %s180 = sphi 0, %s179
    %s194 = sphi 0, %s180
    %s198 = sphi 0, %s198
    %s200 = sphi 0, %s198
    %s201 = sphi 0, %s200
    %s215 = sphi 0, %s201
    %s219 = sphi 0, %s219
    %s221 = sphi 0, %s219
    %s222 = sphi 0, %s221
    %s236 = sphi 0, %s222
    %s240 = sphi 0, %s240
    %s242 = sphi 0, %s240
    %s243 = sphi 0, %s242
    %s257 = sphi 0, %s243
    %s263 = sphi 0, %s265
    %s266 = sphi 0, %s263
    %s267 = sphi 0, %s266
    %s283 = sphi 0, %s267
  $region4: #{csp_layer_forward.1} parent=0 // loop_header_branch
    %20 = sbr.rel (%p18) target = $region8
  $region5: #{csp_layer_forward.1} parent=0 // loop_body
    %s22 = ssub.s32 %s17, 1
    %s23 = ssub.s32 %s17, 2
    %s24 = sadd.s32 %s17, 1
    %s25 = ssub.s32 %s17, %s24
    %p26 = scmp.eq.s32.totalorder %s25, 0
    %s28 = sadd.s32 %s27, 1
    %s29 = scalar_select %p26, %s27, %s28
    %p32 = pneg %p26
    %p33 = scmp.eq.s32.totalorder %s17, 1
    %p34 = por %p32, %p33
    %p35 = scmp.ne.s32.totalorder %s27, %s30
    %p36 = scmp.eq.s32.totalorder %s17, 0
    %p37 = por %p35, %p36
    %p38 = scmp.ne.s32.totalorder %s27, %s30
    %p39 = scmp.eq.s32.totalorder %s22, 1
    %p40 = por %p38, %p39
    %p41 = scmp.ne.s32.totalorder %s30, %s31
    %p42 = scmp.eq.s32.totalorder %s22, 0
    %p43 = por %p41, %p42
    %p44 = scmp.ne.s32.totalorder %s30, %s31
    %p45 = scmp.eq.s32.totalorder %s23, 1
    %p46 = por %p44, %p45
    %p48 = scmp.ne.s32.totalorder %s31, %s47
    %p49 = scmp.eq.s32.totalorder %s23, 0
    %p50 = por %p48, %p49
    %s52 = sadd.s32 %s51, 1
    %p55 = scmp.eq.s32.totalorder %s17, 1
    %p56 = scmp.ne.s32.totalorder %s51, %s53
    %p57 = scmp.eq.s32.totalorder %s17, 0
    %p58 = por %p56, %p57
    %p59 = scmp.ne.s32.totalorder %s51, %s53
    %p60 = scmp.eq.s32.totalorder %s22, 1
    %p61 = por %p59, %p60
    %p62 = scmp.ne.s32.totalorder %s53, %s54
    %p63 = scmp.eq.s32.totalorder %s22, 0
    %p64 = por %p62, %p63
    %p65 = scmp.ne.s32.totalorder %s53, %s54
    %p66 = scmp.eq.s32.totalorder %s23, 1
    %p67 = por %p65, %p66
    %p69 = scmp.ne.s32.totalorder %s54, %s68
    %p70 = scmp.eq.s32.totalorder %s23, 0
    %p71 = por %p69, %p70
    %s73 = sadd.s32 %s72, 1
    %p76 = scmp.eq.s32.totalorder %s17, 1
    %p77 = scmp.ne.s32.totalorder %s72, %s74
    %p78 = scmp.eq.s32.totalorder %s17, 0
    %p79 = por %p77, %p78
    %p80 = scmp.ne.s32.totalorder %s72, %s74
    %p81 = scmp.eq.s32.totalorder %s22, 1
    %p82 = por %p80, %p81
    %p83 = scmp.ne.s32.totalorder %s74, %s75
    %p84 = scmp.eq.s32.totalorder %s22, 0
    %p85 = por %p83, %p84
    %p86 = scmp.ne.s32.totalorder %s74, %s75
    %p87 = scmp.eq.s32.totalorder %s23, 1
    %p88 = por %p86, %p87
    %p90 = scmp.ne.s32.totalorder %s75, %s89
    %p91 = scmp.eq.s32.totalorder %s23, 0
    %p92 = por %p90, %p91
    %s94 = sadd.s32 %s93, 1
    %p97 = scmp.eq.s32.totalorder %s17, 1
    %p98 = scmp.ne.s32.totalorder %s93, %s95
    %p99 = scmp.eq.s32.totalorder %s17, 0
    %p100 = por %p98, %p99
    %p101 = scmp.ne.s32.totalorder %s93, %s95
    %p102 = scmp.eq.s32.totalorder %s22, 1
    %p103 = por %p101, %p102
    %p104 = scmp.ne.s32.totalorder %s95, %s96
    %p105 = scmp.eq.s32.totalorder %s22, 0
    %p106 = por %p104, %p105
    %p107 = scmp.ne.s32.totalorder %s95, %s96
    %p108 = scmp.eq.s32.totalorder %s23, 1
    %p109 = por %p107, %p108
    %p111 = scmp.ne.s32.totalorder %s96, %s110
    %p112 = scmp.eq.s32.totalorder %s23, 0
    %p113 = por %p111, %p112
    %s115 = sadd.s32 %s114, 1
    %p118 = scmp.eq.s32.totalorder %s17, 1
    %p119 = scmp.ne.s32.totalorder %s114, %s116
    %p120 = scmp.eq.s32.totalorder %s17, 0
    %p121 = por %p119, %p120
    %p122 = scmp.ne.s32.totalorder %s114, %s116
    %p123 = scmp.eq.s32.totalorder %s22, 1
    %p124 = por %p122, %p123
    %p125 = scmp.ne.s32.totalorder %s116, %s117
    %p126 = scmp.eq.s32.totalorder %s22, 0
    %p127 = por %p125, %p126
    %p128 = scmp.ne.s32.totalorder %s116, %s117
    %p129 = scmp.eq.s32.totalorder %s23, 1
    %p130 = por %p128, %p129
    %p132 = scmp.ne.s32.totalorder %s117, %s131
    %p133 = scmp.eq.s32.totalorder %s23, 0
    %p134 = por %p132, %p133
    %s136 = sadd.s32 %s135, 1
    %p139 = scmp.eq.s32.totalorder %s17, 1
    %p140 = scmp.ne.s32.totalorder %s135, %s137
    %p141 = scmp.eq.s32.totalorder %s17, 0
    %p142 = por %p140, %p141
    %p143 = scmp.ne.s32.totalorder %s135, %s137
    %p144 = scmp.eq.s32.totalorder %s22, 1
    %p145 = por %p143, %p144
    %p146 = scmp.ne.s32.totalorder %s137, %s138
    %p147 = scmp.eq.s32.totalorder %s22, 0
    %p148 = por %p146, %p147
    %p149 = scmp.ne.s32.totalorder %s137, %s138
    %p150 = scmp.eq.s32.totalorder %s23, 1
    %p151 = por %p149, %p150
    %p153 = scmp.ne.s32.totalorder %s138, %s152
    %p154 = scmp.eq.s32.totalorder %s23, 0
    %p155 = por %p153, %p154
    %s157 = sadd.s32 %s156, 1
    %p160 = scmp.eq.s32.totalorder %s17, 1
    %p161 = scmp.ne.s32.totalorder %s156, %s158
    %p162 = scmp.eq.s32.totalorder %s17, 0
    %p163 = por %p161, %p162
    %p164 = scmp.ne.s32.totalorder %s156, %s158
    %p165 = scmp.eq.s32.totalorder %s22, 1
    %p166 = por %p164, %p165
    %p167 = scmp.ne.s32.totalorder %s158, %s159
    %p168 = scmp.eq.s32.totalorder %s22, 0
    %p169 = por %p167, %p168
    %p170 = scmp.ne.s32.totalorder %s158, %s159
    %p171 = scmp.eq.s32.totalorder %s23, 1
    %p172 = por %p170, %p171
    %p174 = scmp.ne.s32.totalorder %s159, %s173
    %p175 = scmp.eq.s32.totalorder %s23, 0
    %p176 = por %p174, %p175
    %s178 = sadd.s32 %s177, 1
    %p181 = scmp.eq.s32.totalorder %s17, 1
    %p182 = scmp.ne.s32.totalorder %s177, %s179
    %p183 = scmp.eq.s32.totalorder %s17, 0
    %p184 = por %p182, %p183
    %p185 = scmp.ne.s32.totalorder %s177, %s179
    %p186 = scmp.eq.s32.totalorder %s22, 1
    %p187 = por %p185, %p186
    %p188 = scmp.ne.s32.totalorder %s179, %s180
    %p189 = scmp.eq.s32.totalorder %s22, 0
    %p190 = por %p188, %p189
    %p191 = scmp.ne.s32.totalorder %s179, %s180
    %p192 = scmp.eq.s32.totalorder %s23, 1
    %p193 = por %p191, %p192
    %p195 = scmp.ne.s32.totalorder %s180, %s194
    %p196 = scmp.eq.s32.totalorder %s23, 0
    %p197 = por %p195, %p196
    %s199 = sadd.s32 %s198, 1
    %p202 = scmp.eq.s32.totalorder %s17, 1
    %p203 = scmp.ne.s32.totalorder %s198, %s200
    %p204 = scmp.eq.s32.totalorder %s17, 0
    %p205 = por %p203, %p204
    %p206 = scmp.ne.s32.totalorder %s198, %s200
    %p207 = scmp.eq.s32.totalorder %s22, 1
    %p208 = por %p206, %p207
    %p209 = scmp.ne.s32.totalorder %s200, %s201
    %p210 = scmp.eq.s32.totalorder %s22, 0
    %p211 = por %p209, %p210
    %p212 = scmp.ne.s32.totalorder %s200, %s201
    %p213 = scmp.eq.s32.totalorder %s23, 1
    %p214 = por %p212, %p213
    %p216 = scmp.ne.s32.totalorder %s201, %s215
    %p217 = scmp.eq.s32.totalorder %s23, 0
    %p218 = por %p216, %p217
    %s220 = sadd.s32 %s219, 1
    %p223 = scmp.eq.s32.totalorder %s17, 1
    %p224 = scmp.ne.s32.totalorder %s219, %s221
    %p225 = scmp.eq.s32.totalorder %s17, 0
    %p226 = por %p224, %p225
    %p227 = scmp.ne.s32.totalorder %s219, %s221
    %p228 = scmp.eq.s32.totalorder %s22, 1
    %p229 = por %p227, %p228
    %p230 = scmp.ne.s32.totalorder %s221, %s222
    %p231 = scmp.eq.s32.totalorder %s22, 0
    %p232 = por %p230, %p231
    %p233 = scmp.ne.s32.totalorder %s221, %s222
    %p234 = scmp.eq.s32.totalorder %s23, 1
    %p235 = por %p233, %p234
    %p237 = scmp.ne.s32.totalorder %s222, %s236
    %p238 = scmp.eq.s32.totalorder %s23, 0
    %p239 = por %p237, %p238
    %s241 = sadd.s32 %s240, 1
    %p244 = scmp.eq.s32.totalorder %s17, 1
    %p245 = scmp.ne.s32.totalorder %s240, %s242
    %p246 = scmp.eq.s32.totalorder %s17, 0
    %p247 = por %p245, %p246
    %p248 = scmp.ne.s32.totalorder %s240, %s242
    %p249 = scmp.eq.s32.totalorder %s22, 1
    %p250 = por %p248, %p249
    %p251 = scmp.ne.s32.totalorder %s242, %s243
    %p252 = scmp.eq.s32.totalorder %s22, 0
    %p253 = por %p251, %p252
    %p254 = scmp.ne.s32.totalorder %s242, %s243
    %p255 = scmp.eq.s32.totalorder %s23, 1
    %p256 = por %p254, %p255
    %p258 = scmp.ne.s32.totalorder %s243, %s257
    %p259 = scmp.eq.s32.totalorder %s23, 0
    %p260 = por %p258, %p259
    %s261 = ssub.s32 %s17, %s24
    %p262 = scmp.eq.s32.totalorder %s261, 0
    %s264 = sadd.s32 %s263, 1
    %s265 = scalar_select %p262, %s263, %s264
    %p268 = pneg %p262
    %p269 = scmp.eq.s32.totalorder %s17, 1
    %p270 = por %p268, %p269
    %p271 = scmp.ne.s32.totalorder %s263, %s266
    %p272 = scmp.eq.s32.totalorder %s17, 0
    %p273 = por %p271, %p272
    %p274 = scmp.ne.s32.totalorder %s263, %s266
    %p275 = scmp.eq.s32.totalorder %s22, 1
    %p276 = por %p274, %p275
    %p277 = scmp.ne.s32.totalorder %s266, %s267
    %p278 = scmp.eq.s32.totalorder %s22, 0
    %p279 = por %p277, %p278
    %p280 = scmp.ne.s32.totalorder %s266, %s267
    %p281 = scmp.eq.s32.totalorder %s23, 1
    %p282 = por %p280, %p281
    %p284 = scmp.ne.s32.totalorder %s267, %s283
    %p285 = scmp.eq.s32.totalorder %s23, 0
    %p286 = por %p284, %p285
    %p287 = scmp.le.s32.totalorder 1, %s17
    %p288 = scmp.lt.s32.totalorder %s17, 3
    %p289 = pnand %p287, %p288
    %p290 = pneg %p289
    // Predicated region
    $region9: #{csp_layer_forward.1} parent=5 // pred_check
      _
    $region10: #{csp_layer_forward.1} parent=5 // pred_check_branch
      %292 = sbr.rel (%p289) target = $region12
    $region11: #{csp_layer_forward.1} parent=5 // pred_region
      %s293 = ssub.s32 %s17, 1
      // Predicated region
      $region13: #{csp_layer_forward.1} parent=11 // pred_check
        %p294 = pneg %p64
      $region14: #{csp_layer_forward.1} parent=11 // pred_check_branch
        %296 = sbr.rel (%p294) target = $region16
      $region15: #{csp_layer_forward.1} parent=11 // pred_region
        _
      $region16: #{csp_layer_forward.1} parent=11 // pred_fallthru
        _
      // Predicated region
      $region17: #{csp_layer_forward.1} parent=11 // pred_check
        %p297 = pneg %p85
      $region18: #{csp_layer_forward.1} parent=11 // pred_check_branch
        %299 = sbr.rel (%p297) target = $region20
      $region19: #{csp_layer_forward.1} parent=11 // pred_region
        _
      $region20: #{csp_layer_forward.1} parent=11 // pred_fallthru
        _
      // Predicated region
      $region21: #{csp_layer_forward.1} parent=11 // pred_check
        %p300 = pneg %p106
      $region22: #{csp_layer_forward.1} parent=11 // pred_check_branch
        %302 = sbr.rel (%p300) target = $region24
      $region23: #{csp_layer_forward.1} parent=11 // pred_region
        _
      $region24: #{csp_layer_forward.1} parent=11 // pred_fallthru
        _
      // Predicated region
      $region25: #{csp_layer_forward.1} parent=11 // pred_check
        %p303 = pneg %p127
      $region26: #{csp_layer_forward.1} parent=11 // pred_check_branch
        %305 = sbr.rel (%p303) target = $region28
      $region27: #{csp_layer_forward.1} parent=11 // pred_region
        _
      $region28: #{csp_layer_forward.1} parent=11 // pred_fallthru
        _
      // Predicated region
      $region29: #{csp_layer_forward.1} parent=11 // pred_check
        %p306 = pneg %p148
      $region30: #{csp_layer_forward.1} parent=11 // pred_check_branch
        %308 = sbr.rel (%p306) target = $region32
      $region31: #{csp_layer_forward.1} parent=11 // pred_region
        _
      $region32: #{csp_layer_forward.1} parent=11 // pred_fallthru
        _
      // Predicated region
      $region33: #{csp_layer_forward.1} parent=11 // pred_check
        %p309 = pneg %p169
      $region34: #{csp_layer_forward.1} parent=11 // pred_check_branch
        %311 = sbr.rel (%p309) target = $region36
      $region35: #{csp_layer_forward.1} parent=11 // pred_region
        _
      $region36: #{csp_layer_forward.1} parent=11 // pred_fallthru
        _
      // Predicated region
      $region37: #{csp_layer_forward.1} parent=11 // pred_check
        %p312 = pneg %p190
      $region38: #{csp_layer_forward.1} parent=11 // pred_check_branch
        %314 = sbr.rel (%p312) target = $region40
      $region39: #{csp_layer_forward.1} parent=11 // pred_region
        _
      $region40: #{csp_layer_forward.1} parent=11 // pred_fallthru
        _
      // Predicated region
      $region41: #{csp_layer_forward.1} parent=11 // pred_check
        %p315 = pneg %p211
      $region42: #{csp_layer_forward.1} parent=11 // pred_check_branch
        %317 = sbr.rel (%p315) target = $region44
      $region43: #{csp_layer_forward.1} parent=11 // pred_region
        _
      $region44: #{csp_layer_forward.1} parent=11 // pred_fallthru
        _
      // Predicated region
      $region45: #{csp_layer_forward.1} parent=11 // pred_check
        %p318 = pneg %p232
      $region46: #{csp_layer_forward.1} parent=11 // pred_check_branch
        %320 = sbr.rel (%p318) target = $region48
      $region47: #{csp_layer_forward.1} parent=11 // pred_region
        _
      $region48: #{csp_layer_forward.1} parent=11 // pred_fallthru
        _
      // Predicated region
      $region49: #{csp_layer_forward.1} parent=11 // pred_check
        %p321 = pneg %p253
      $region50: #{csp_layer_forward.1} parent=11 // pred_check_branch
        %323 = sbr.rel (%p321) target = $region52
      $region51: #{csp_layer_forward.1} parent=11 // pred_region
        _
      $region52: #{csp_layer_forward.1} parent=11 // pred_fallthru
        _
    $region12: #{csp_layer_forward.1} parent=5 // pred_fallthru
      _
    %p324 = scmp.lt.s32.totalorder %s17, 2
    // Predicated region
    $region53: #{csp_layer_forward.1} parent=5 // pred_check
      %p325 = pneg %p324
    $region54: #{csp_layer_forward.1} parent=5 // pred_check_branch
      %327 = sbr.rel (%p325) target = $region56
    $region55: #{csp_layer_forward.1} parent=5 // pred_region
      // Predicated region
      $region57: #{csp_layer_forward.1} parent=55 // pred_check
        %p328 = pneg %p37
      $region58: #{csp_layer_forward.1} parent=55 // pred_check_branch
        %330 = sbr.rel (%p328) target = $region60
      $region59: #{csp_layer_forward.1} parent=55 // pred_region
        %p331 = scmp.lt.s32.totalorder %s17, 1
        %s332 = scalar_select %p331, %s17, 1
        %s333 = smul.addr %s332, 4
        %s334 = smul.addr %s333, 8
        %s335 = scalar_lea.vmem %s0, %s334
      $region60: #{csp_layer_forward.1} parent=55 // pred_fallthru
        _
    $region56: #{csp_layer_forward.1} parent=5 // pred_fallthru
      _
    %p336 = scmp.le.s32.totalorder 1, %s17
    %p337 = scmp.lt.s32.totalorder %s17, 3
    %p338 = pnand %p336, %p337
    %p339 = pneg %p338
    // Predicated region
    $region61: #{csp_layer_forward.1} parent=5 // pred_check
      _
    $region62: #{csp_layer_forward.1} parent=5 // pred_check_branch
      %341 = sbr.rel (%p338) target = $region64
    $region63: #{csp_layer_forward.1} parent=5 // pred_region
      %s342 = ssub.s32 %s17, 1
      %p343 = scmp.lt.s32.totalorder %s22, 1
      %s344 = scalar_select %p343, %s22, 1
      %s345 = smul.addr %s344, 4
      %s346 = smul.addr %s345, 8
      %s347 = scalar_lea.vmem %s0, %s346
      %p348 = pneg %p43
      %p349 = pneg %p40
      %p350 = pneg %p64
      %p351 = pneg %p61
      %p352 = pneg %p85
      %p353 = pneg %p82
      %p354 = pneg %p106
      %p355 = pneg %p103
      %p356 = pneg %p127
      %p357 = pneg %p124
      %p358 = pneg %p148
      %p359 = pneg %p145
      %p360 = pneg %p169
      %p361 = pneg %p166
      %p362 = pneg %p190
      %p363 = pneg %p187
      %p364 = pneg %p211
      %p365 = pneg %p208
      %p366 = pneg %p232
      %p367 = pneg %p229
      %p368 = pneg %p253
      %p369 = pneg %p250
      %p370 = pneg %p279
      %p371 = pneg %p276
      %p372 = scmp.lt.s32.totalorder %s22, 1
      %s373 = scalar_select %p372, %s22, 1
      %s374 = smul.addr %s373, 4
      %s375 = smul.addr %s374, 8
      %s376 = scalar_lea.vmem %s11, %s375
      %p377 = scmp.lt.s32.totalorder %s22, 1
      %s378 = scalar_select %p377, %s22, 1
      %s379 = smul.addr %s378, 4
      %s380 = smul.addr %s379, 8
      %s381 = scalar_lea.vmem %s0, %s380
      %p382 = scmp.lt.s32.totalorder %s22, 1
      %s383 = scalar_select %p382, %s22, 1
      %s384 = smul.addr %s383, 4
      %s385 = smul.addr %s384, 8
      %s386 = scalar_lea.vmem %s11, %s385
      %v388 = vld [vmem:[%s381] sm:$0xff]
      %v389 = vld [vmem:[%s381 + $0x8] sm:$0xff]
      %v390 = vld [vmem:[%s381 + $0x10] sm:$0xff]
      %v391 = vld [vmem:[%s381 + $0x18] sm:$0xff]
      %v392 = vld [vmem:[%s1] sm:$0xf]
      %v393 = vld [vmem:[%s1 + $0x4] sm:$0xf]
      %v394 = vpack.c.bf16 %v390, %v388
      %v395 = vpack.c.bf16 %v391, %v389
      %v396 = vld [vmem:[%s2] sm:$0xff]
      %v397 = vld [vmem:[%s2 + $0x8] sm:$0xff]
      %399 = vset.pattern.permute.xlu0 0
      %400 = vperm.xlu0 %399, %v396
      %v401 = vpop.permute.xlu0 %400
      %404 = vset.pattern.permute.xlu0 0
      %405 = vperm.xlu0 %404, %v397
      %v406 = vpop.permute.xlu0 %405
      %v410 = vunpack.c.l.b16 %v392
      %v411 = vunpack.c.l.b16 %v393
      %v412 = vpack.c.b16 %v411, %v410
      %vm413 = vcmask 130048
      %v415 = vsel %vm413, %v412, 0
      %417 = vmatprep.subr.bf16.mxu0 %v395
      %418 = vmatpush1.bf16.msra.mxu0 %v394
      %419 = vmatprep.subr.bf16.mxu0 0
      %420 = vmatpush1.bf16.msra.mxu0 0
      %421 = vmatprep.subr.bf16.mxu0 0
      %422 = vmatpush1.bf16.msra.mxu0 0
      %423 = vmatprep.subr.bf16.mxu0 0
      %424 = vmatpush1.bf16.msra.mxu0 0
      %425 = vmatprep.subr.bf16.mxu0 0
      %426 = vmatpush1.bf16.msra.mxu0 0
      %427 = vmatprep.subr.bf16.mxu0 0
      %428 = vmatpush1.bf16.msra.mxu0 0
      %429 = vmatprep.subr.bf16.mxu0 0
      %430 = vmatpush1.bf16.msra.mxu0 0
      %431 = vmatprep.subr.bf16.mxu0 0
      %432 = vmatpush1.bf16.msra.mxu0 0
      %433 = vmatprep.subr.bf16.mxu0 0
      %434 = vmatpush1.bf16.msra.mxu0 0
      %435 = vmatprep.subr.bf16.mxu0 0
      %436 = vmatpush1.bf16.msra.mxu0 0
      %437 = vmatprep.subr.bf16.mxu0 0
      %438 = vmatpush1.bf16.msra.mxu0 0
      %439 = vmatprep.subr.bf16.mxu0 0
      %440 = vmatpush1.bf16.msra.mxu0 0
      %441 = vmatprep.subr.bf16.mxu0 0
      %442 = vmatpush1.bf16.msra.mxu0 0
      %443 = vmatprep.subr.bf16.mxu0 0
      %444 = vmatpush1.bf16.msra.mxu0 0
      %445 = vmatprep.subr.bf16.mxu0 0
      %446 = vmatpush1.bf16.msra.mxu0 0
      %447 = vmatprep.subr.bf16.mxu0 0
      %448 = vmatpush1.bf16.msra.mxu0 0
      %449 = vmatprep.mubr.bf16.mxu0 0
      %450 = vmatmul.mubr.bf16.gmra.mrb[0].mxu0 %v415
      %v451 = vpop.f32.mrb[0].mxu0
      %v452 = vadd.f32 %v401, %v451
      %v453 = vpop.f32.mrb[0].mxu0
      %v454 = vadd.f32 %v401, %v453
      %v455 = vpop.f32.mrb[0].mxu0
      %v456 = vadd.f32 %v406, %v455
      %v457 = vpop.f32.mrb[0].mxu0
      %v458 = vadd.f32 %v406, %v457
      %459 = vdwg.mxu0
      %v460 = vsub.f32 0.0, %v452
      %v461 = vsub.f32 0.0, %v454
      %v462 = vsub.f32 0.0, %v456
      %v463 = vsub.f32 0.0, %v458
      %v464 = vmul.f32 %v460, 1.442695
      %v465 = vpow.pop %v464
      %v466 = vmul.f32 %v461, 1.442695
      %v467 = vpow.pop %v466
      %v468 = vmul.f32 %v462, 1.442695
      %v469 = vpow.pop %v468
      %v470 = vmul.f32 %v463, 1.442695
      %v471 = vpow.pop %v470
      %v472 = vadd.f32 %v465, 1.0
      %v473 = vadd.f32 %v467, 1.0
      %v474 = vadd.f32 %v469, 1.0
      %v475 = vadd.f32 %v471, 1.0
      %v476 = vrcp.pop %v472
      %v477 = vrcp.pop %v473
      %v478 = vrcp.pop %v474
      %v479 = vrcp.pop %v475
      %v480 = vmul.f32 %v452, %v476
      %v481 = vmul.f32 %v454, %v477
      %v482 = vmul.f32 %v456, %v478
      %v483 = vmul.f32 %v458, %v479
      %v484 = vld [vmem:[%s3] sm:$0xf]
      %v485 = vpack.c.bf16 %v480, %v480
      %v486 = vpack.c.bf16 %v481, %v481
      %v487 = vld [vmem:[%s4] sm:$0xff]
      %489 = vset.pattern.permute.xlu0 0
      %490 = vperm.xlu0 %489, %v487
      %v491 = vpop.permute.xlu0 %490
      %vm493 = vcmask 64512
      %v495 = vsel %vm493, %v484, 0
      %vm497 = vcmask 1043456
      %v499 = vsel %vm497, %v485, 0
      %v502 = vsel %vm497, %v486, 0
      %504 = vmatprep.subr.bf16.mxu0 %v502
      %505 = vmatpush1.bf16.msra.mxu0 %v499
      %506 = vmatprep.subr.bf16.mxu0 0
      %507 = vmatpush1.bf16.msra.mxu0 0
      %508 = vmatprep.subr.bf16.mxu0 0
      %509 = vmatpush1.bf16.msra.mxu0 0
      %510 = vmatprep.subr.bf16.mxu0 0
      %511 = vmatpush1.bf16.msra.mxu0 0
      %512 = vmatprep.subr.bf16.mxu0 0
      %513 = vmatpush1.bf16.msra.mxu0 0
      %514 = vmatprep.subr.bf16.mxu0 0
      %515 = vmatpush1.bf16.msra.mxu0 0
      %516 = vmatprep.subr.bf16.mxu0 0
      %517 = vmatpush1.bf16.msra.mxu0 0
      %518 = vmatprep.subr.bf16.mxu0 0
      %519 = vmatpush1.bf16.msra.mxu0 0
      %520 = vmatprep.subr.bf16.mxu0 0
      %521 = vmatpush1.bf16.msra.mxu0 0
      %522 = vmatprep.subr.bf16.mxu0 0
      %523 = vmatpush1.bf16.msra.mxu0 0
      %524 = vmatprep.subr.bf16.mxu0 0
      %525 = vmatpush1.bf16.msra.mxu0 0
      %526 = vmatprep.subr.bf16.mxu0 0
      %527 = vmatpush1.bf16.msra.mxu0 0
      %528 = vmatprep.subr.bf16.mxu0 0
      %529 = vmatpush1.bf16.msra.mxu0 0
      %530 = vmatprep.subr.bf16.mxu0 0
      %531 = vmatpush1.bf16.msra.mxu0 0
      %532 = vmatprep.subr.bf16.mxu0 0
      %533 = vmatpush1.bf16.msra.mxu0 0
      %534 = vmatprep.subr.bf16.mxu0 0
      %535 = vmatpush1.bf16.msra.mxu0 0
      %536 = vmatprep.mubr.bf16.mxu0 0
      %537 = vmatmul.mubr.bf16.gmra.mrb[0].mxu0 %v495
      %v538 = vpop.f32.mrb[0].mxu0
      %v539 = vadd.f32 %v491, %v538
      %v540 = vpop.f32.mrb[0].mxu0
      %v541 = vadd.f32 %v491, %v540
      %v542 = vpop.f32.mrb[0].mxu0
      %v543 = vpop.f32.mrb[0].mxu0
      %544 = vdwg.mxu0
      %v545 = vsub.f32 0.0, %v539
      %v546 = vsub.f32 0.0, %v541
      %v547 = vmul.f32 %v545, 1.442695
      %v548 = vpow.pop %v547
      %v549 = vmul.f32 %v546, 1.442695
      %v550 = vpow.pop %v549
      %v551 = vadd.f32 %v548, 1.0
      %v552 = vadd.f32 %v550, 1.0
      %v553 = vrcp.pop %v551
      %v554 = vrcp.pop %v552
      %v555 = vmul.f32 %v539, %v553
      %v556 = vmul.f32 %v541, %v554
      %557 = vrot.lane.b32.xlu0 %v555, 17
      %v558 = vpop.permute.xlu0 %557
      %559 = vrot.lane.b32.xlu0 %v556, 17
      %v560 = vpop.permute.xlu0 %559
      %v561 = vlaneseq
      %v562 = vand.u32 %v561, 127
      %vm563 = vcmp.lt.s32.totalorder %v562, 17
      %v564 = vsel %vm563, %v558, %v560
      %v565 = vsel %vm563, %v560, %v558
      %v566 = vld [vmem:[%s10] ss:$8 sm:$0x3]
      %v568 = vlaneseq
      %v569 = vshrl.u32 %v568, 7
      %v570 = vsub.s32 0, %v569
      %v571 = vrot.slane %v566, %v570
      %v572 = vlaneseq
      %v573 = vshrl.u32 %v572, 7
      %v574 = vsub.s32 1, %v573
      %v575 = vrot.slane %v566, %v574
      %v578 = vmul.f32 %v565, %v571
      %v579 = vmul.f32 %v564, %v575
      %v580 = vpack.c.bf16 %v578, %v578
      %v581 = vpack.c.bf16 %v579, %v579
      %582 = vrot.lane.b32.xlu0 %v555, 16
      %v583 = vpop.permute.xlu0 %582
      %584 = vrot.lane.b32.xlu0 %v556, 16
      %v585 = vpop.permute.xlu0 %584
      %vm586 = vcmp.lt.s32.totalorder %v562, 16
      %v587 = vsel %vm586, %v583, %v585
      %v588 = vsel %vm586, %v585, %v583
      %s589 = scalar_lea.vmem %s10, 1
      %v590 = vld [vmem:[%s589] ss:$8 sm:$0x3]
      %v592 = vlaneseq
      %v593 = vshrl.u32 %v592, 7
      %v594 = vsub.s32 0, %v593
      %v595 = vrot.slane %v590, %v594
      %v596 = vlaneseq
      %v597 = vshrl.u32 %v596, 7
      %v598 = vsub.s32 1, %v597
      %v599 = vrot.slane %v590, %v598
      %v602 = vmul.f32 %v588, %v595
      %v603 = vmul.f32 %v587, %v599
      %v604 = vpack.c.bf16 %v602, %v602
      %v605 = vpack.c.bf16 %v603, %v603
      %606 = vrot.lane.b32.xlu0 %v555, 15
      %v607 = vpop.permute.xlu0 %606
      %608 = vrot.lane.b32.xlu0 %v556, 15
      %v609 = vpop.permute.xlu0 %608
      %vm610 = vcmp.lt.s32.totalorder %v562, 15
      %v611 = vsel %vm610, %v607, %v609
      %v612 = vsel %vm610, %v609, %v607
      %s613 = scalar_lea.vmem %s10, 2
      %v614 = vld [vmem:[%s613] ss:$8 sm:$0x3]
      %v616 = vlaneseq
      %v617 = vshrl.u32 %v616, 7
      %v618 = vsub.s32 0, %v617
      %v619 = vrot.slane %v614, %v618
      %v620 = vlaneseq
      %v621 = vshrl.u32 %v620, 7
      %v622 = vsub.s32 1, %v621
      %v623 = vrot.slane %v614, %v622
      %v626 = vmul.f32 %v612, %v619
      %v627 = vmul.f32 %v611, %v623
      %v628 = vpack.c.bf16 %v626, %v626
      %v629 = vpack.c.bf16 %v627, %v627
      %630 = vrot.lane.b32.xlu0 %v555, 1
      %v631 = vpop.permute.xlu0 %630
      %632 = vrot.lane.b32.xlu0 %v556, 1
      %v633 = vpop.permute.xlu0 %632
      %vm634 = vcmp.lt.s32.totalorder %v562, 1
      %v635 = vsel %vm634, %v631, %v633
      %v636 = vsel %vm634, %v633, %v631
      %s637 = scalar_lea.vmem %s10, 3
      %v638 = vld [vmem:[%s637] ss:$8 sm:$0x3]
      %v640 = vlaneseq
      %v641 = vshrl.u32 %v640, 7
      %v642 = vsub.s32 0, %v641
      %v643 = vrot.slane %v638, %v642
      %v644 = vlaneseq
      %v645 = vshrl.u32 %v644, 7
      %v646 = vsub.s32 1, %v645
      %v647 = vrot.slane %v638, %v646
      %v650 = vmul.f32 %v636, %v643
      %v651 = vmul.f32 %v635, %v647
      %v652 = vpack.c.bf16 %v650, %v650
      %v653 = vpack.c.bf16 %v651, %v651
      %v654 = vpack.c.bf16 %v555, %v555
      %v655 = vpack.c.bf16 %v556, %v556
      %656 = vrot.lane.b32.xlu0 %v555, 127
      %v657 = vpop.permute.xlu0 %656
      %658 = vrot.lane.b32.xlu0 %v556, 127
      %v659 = vpop.permute.xlu0 %658
      %vm660 = vcmp.lt.s32.totalorder %v562, 127
      %v661 = vsel %vm660, %v657, %v659
      %v662 = vsel %vm660, %v659, %v657
      %s663 = scalar_lea.vmem %s10, 5
      %v664 = vld [vmem:[%s663] ss:$8 sm:$0x3]
      %v666 = vlaneseq
      %v667 = vshrl.u32 %v666, 7
      %v668 = vsub.s32 0, %v667
      %v669 = vrot.slane %v664, %v668
      %v670 = vlaneseq
      %v671 = vshrl.u32 %v670, 7
      %v672 = vsub.s32 1, %v671
      %v673 = vrot.slane %v664, %v672
      %v676 = vmul.f32 %v661, %v669
      %v677 = vmul.f32 %v662, %v673
      %v678 = vpack.c.bf16 %v676, %v676
      %v679 = vpack.c.bf16 %v677, %v677
      %680 = vrot.lane.b32.xlu0 %v555, 113
      %v681 = vpop.permute.xlu0 %680
      %682 = vrot.lane.b32.xlu0 %v556, 113
      %v683 = vpop.permute.xlu0 %682
      %vm684 = vcmp.lt.s32.totalorder %v562, 113
      %v685 = vsel %vm684, %v681, %v683
      %v686 = vsel %vm684, %v683, %v681
      %s687 = scalar_lea.vmem %s10, 6
      %v688 = vld [vmem:[%s687] ss:$8 sm:$0x3]
      %v690 = vlaneseq
      %v691 = vshrl.u32 %v690, 7
      %v692 = vsub.s32 0, %v691
      %v693 = vrot.slane %v688, %v692
      %v694 = vlaneseq
      %v695 = vshrl.u32 %v694, 7
      %v696 = vsub.s32 1, %v695
      %v697 = vrot.slane %v688, %v696
      %v700 = vmul.f32 %v685, %v693
      %v701 = vmul.f32 %v686, %v697
      %v702 = vpack.c.bf16 %v700, %v700
      %v703 = vpack.c.bf16 %v701, %v701
      %704 = vrot.lane.b32.xlu0 %v555, 112
      %v705 = vpop.permute.xlu0 %704
      %706 = vrot.lane.b32.xlu0 %v556, 112
      %v707 = vpop.permute.xlu0 %706
      %vm708 = vcmp.lt.s32.totalorder %v562, 112
      %v709 = vsel %vm708, %v705, %v707
      %v710 = vsel %vm708, %v707, %v705
      %s711 = scalar_lea.vmem %s10, 7
      %v712 = vld [vmem:[%s711] ss:$8 sm:$0x3]
      %v714 = vlaneseq
      %v715 = vshrl.u32 %v714, 7
      %v716 = vsub.s32 0, %v715
      %v717 = vrot.slane %v712, %v716
      %v718 = vlaneseq
      %v719 = vshrl.u32 %v718, 7
      %v720 = vsub.s32 1, %v719
      %v721 = vrot.slane %v712, %v720
      %v724 = vmul.f32 %v709, %v717
      %v725 = vmul.f32 %v710, %v721
      %v726 = vpack.c.bf16 %v724, %v724
      %v727 = vpack.c.bf16 %v725, %v725
      %728 = vrot.lane.b32.xlu0 %v555, 111
      %v729 = vpop.permute.xlu0 %728
      %730 = vrot.lane.b32.xlu0 %v556, 111
      %v731 = vpop.permute.xlu0 %730
      %vm732 = vcmp.lt.s32.totalorder %v562, 111
      %v733 = vsel %vm732, %v729, %v731
      %v734 = vsel %vm732, %v731, %v729
      %s735 = scalar_lea.vmem %s10, 16
      %v736 = vld [vmem:[%s735] ss:$8 sm:$0x3]
      %v738 = vlaneseq
      %v739 = vshrl.u32 %v738, 7
      %v740 = vsub.s32 0, %v739
      %v741 = vrot.slane %v736, %v740
      %v742 = vlaneseq
      %v743 = vshrl.u32 %v742, 7
      %v744 = vsub.s32 1, %v743
      %v745 = vrot.slane %v736, %v744
      %v748 = vmul.f32 %v733, %v741
      %v749 = vmul.f32 %v734, %v745
      %v750 = vpack.c.bf16 %v748, %v748
      %v751 = vpack.c.bf16 %v749, %v749
      %v754 = vrot.slane %v604, 4
      %v755 = vrot.slane %v605, 4
      %v758 = vrot.slane %v652, 4
      %v759 = vrot.slane %v653, 4
      %v762 = vrot.slane %v678, 4
      %v763 = vrot.slane %v679, 4
      %v766 = vrot.slane %v726, 4
      %v767 = vrot.slane %v727, 4
      %v770 = vsel %vm497, %v580, %v754
      %v774 = vsel %vm497, %v581, %v755
      %v778 = vsel %vm497, %v628, %v758
      %v782 = vsel %vm497, %v629, %v759
      %v786 = vsel %vm497, %v654, %v762
      %v790 = vsel %vm497, %v655, %v763
      %v794 = vsel %vm497, %v702, %v766
      %v798 = vsel %vm497, %v703, %v767
      %v800 = vld [vmem:[%s5] sm:$0xf]
      %v801 = vld [vmem:[%s6] sm:$0xff]
      %803 = vset.pattern.permute.xlu0 0
      %804 = vperm.xlu0 %803, %v801
      %v805 = vpop.permute.xlu0 %804
      %vm807 = vcmask 588800
      %v809 = vsel %vm807, %v800, 0
      %v812 = vsel %vm497, %v750, 0
      %v815 = vsel %vm497, %v751, 0
      %817 = vmatprep.subr.bf16.mxu0 %v774
      %818 = vmatpush1.bf16.msra.mxu0 %v770
      %819 = vmatprep.subr.bf16.mxu0 %v782
      %820 = vmatpush1.bf16.msra.mxu0 %v778
      %821 = vmatprep.subr.bf16.mxu0 %v790
      %822 = vmatpush1.bf16.msra.mxu0 %v786
      %823 = vmatprep.subr.bf16.mxu0 %v798
      %824 = vmatpush1.bf16.msra.mxu0 %v794
      %825 = vmatprep.subr.bf16.mxu0 %v815
      %826 = vmatpush1.bf16.msra.mxu0 %v812
      %827 = vmatprep.subr.bf16.mxu0 0
      %828 = vmatpush1.bf16.msra.mxu0 0
      %829 = vmatprep.subr.bf16.mxu0 0
      %830 = vmatpush1.bf16.msra.mxu0 0
      %831 = vmatprep.subr.bf16.mxu0 0
      %832 = vmatpush1.bf16.msra.mxu0 0
      %833 = vmatprep.subr.bf16.mxu0 0
      %834 = vmatpush1.bf16.msra.mxu0 0
      %835 = vmatprep.subr.bf16.mxu0 0
      %836 = vmatpush1.bf16.msra.mxu0 0
      %837 = vmatprep.subr.bf16.mxu0 0
      %838 = vmatpush1.bf16.msra.mxu0 0
      %839 = vmatprep.subr.bf16.mxu0 0
      %840 = vmatpush1.bf16.msra.mxu0 0
      %841 = vmatprep.subr.bf16.mxu0 0
      %842 = vmatpush1.bf16.msra.mxu0 0
      %843 = vmatprep.subr.bf16.mxu0 0
      %844 = vmatpush1.bf16.msra.mxu0 0
      %845 = vmatprep.subr.bf16.mxu0 0
      %846 = vmatpush1.bf16.msra.mxu0 0
      %847 = vmatprep.subr.bf16.mxu0 0
      %848 = vmatpush1.bf16.msra.mxu0 0
      %849 = vmatprep.mubr.bf16.mxu0 0
      %850 = vmatmul.mubr.bf16.gmra.mrb[0].mxu0 %v809
      %v851 = vpop.f32.mrb[0].mxu0
      %v852 = vadd.f32 %v805, %v851
      %v853 = vpop.f32.mrb[0].mxu0
      %v854 = vadd.f32 %v805, %v853
      %v855 = vpop.f32.mrb[0].mxu0
      %v856 = vpop.f32.mrb[0].mxu0
      %857 = vdwg.mxu0
      %v858 = vsub.f32 0.0, %v852
      %v859 = vsub.f32 0.0, %v854
      %v860 = vmul.f32 %v858, 1.442695
      %v861 = vpow.pop %v860
      %v862 = vmul.f32 %v859, 1.442695
      %v863 = vpow.pop %v862
      %v864 = vadd.f32 %v861, 1.0
      %v865 = vadd.f32 %v863, 1.0
      %v866 = vrcp.pop %v864
      %v867 = vrcp.pop %v865
      %v868 = vmul.f32 %v852, %v866
      %v869 = vmul.f32 %v854, %v867
      %v870 = vadd.f32 %v868, %v480
      %v871 = vadd.f32 %v869, %v481
      %v872 = vld [vmem:[%s7] sm:$0xf]
      %v873 = vld [vmem:[%s7 + $0x4] sm:$0xf]
      %v874 = vpack.c.bf16 %v870, %v870
      %v875 = vpack.c.bf16 %v871, %v871
      %v876 = vld [vmem:[%s8] sm:$0xf]
      %v877 = vld [vmem:[%s8 + $0x4] sm:$0xf]
      %v878 = vpack.c.bf16 %v482, %v482
      %v879 = vpack.c.bf16 %v483, %v483
      %v882 = vunpack.c.l.b16 %v876
      %v883 = vunpack.c.l.b16 %v877
      %v884 = vpack.c.b16 %v883, %v882
      %v886 = vsel %vm493, %v884, 0
      %v889 = vsel %vm497, %v878, 0
      %v892 = vsel %vm497, %v879, 0
      %894 = vmatprep.subr.bf16.mxu0 %v892
      %895 = vmatpush1.bf16.msra.mxu0 %v889
      %896 = vmatprep.subr.bf16.mxu0 0
      %897 = vmatpush1.bf16.msra.mxu0 0
      %898 = vmatprep.subr.bf16.mxu0 0
      %899 = vmatpush1.bf16.msra.mxu0 0
      %900 = vmatprep.subr.bf16.mxu0 0
      %901 = vmatpush1.bf16.msra.mxu0 0
      %902 = vmatprep.subr.bf16.mxu0 0
      %903 = vmatpush1.bf16.msra.mxu0 0
      %904 = vmatprep.subr.bf16.mxu0 0
      %905 = vmatpush1.bf16.msra.mxu0 0
      %906 = vmatprep.subr.bf16.mxu0 0
      %907 = vmatpush1.bf16.msra.mxu0 0
      %908 = vmatprep.subr.bf16.mxu0 0
      %909 = vmatpush1.bf16.msra.mxu0 0
      %910 = vmatprep.subr.bf16.mxu0 0
      %911 = vmatpush1.bf16.msra.mxu0 0
      %912 = vmatprep.subr.bf16.mxu0 0
      %913 = vmatpush1.bf16.msra.mxu0 0
      %914 = vmatprep.subr.bf16.mxu0 0
      %915 = vmatpush1.bf16.msra.mxu0 0
      %916 = vmatprep.subr.bf16.mxu0 0
      %917 = vmatpush1.bf16.msra.mxu0 0
      %918 = vmatprep.subr.bf16.mxu0 0
      %919 = vmatpush1.bf16.msra.mxu0 0
      %920 = vmatprep.subr.bf16.mxu0 0
      %921 = vmatpush1.bf16.msra.mxu0 0
      %922 = vmatprep.subr.bf16.mxu0 0
      %923 = vmatpush1.bf16.msra.mxu0 0
      %924 = vmatprep.subr.bf16.mxu0 0
      %925 = vmatpush1.bf16.msra.mxu0 0
      %926 = vmatprep.mubr.bf16.mxu0 0
      %927 = vmatmul.mubr.bf16.gmra.mrb[0].mxu0 %v886
      %v928 = vpop.f32.mrb[0].mxu0
      %v929 = vadd.f32 0.0, %v928
      %v930 = vpop.f32.mrb[0].mxu0
      %v931 = vadd.f32 0.0, %v930
      %v932 = vpop.f32.mrb[0].mxu0
      %v933 = vadd.f32 0.0, %v932
      %v934 = vpop.f32.mrb[0].mxu0
      %v935 = vadd.f32 0.0, %v934
      %936 = vdwg.mxu0
      %v939 = vunpack.c.l.b16 %v872
      %v940 = vunpack.c.l.b16 %v873
      %v941 = vpack.c.b16 %v940, %v939
      %v943 = vsel %vm493, %v941, 0
      %v946 = vsel %vm497, %v874, 0
      %v949 = vsel %vm497, %v875, 0
      %951 = vmatprep.subr.bf16.mxu0 %v949
      %952 = vmatpush1.bf16.msra.mxu0 %v946
      %953 = vmatprep.subr.bf16.mxu0 0
      %954 = vmatpush1.bf16.msra.mxu0 0
      %955 = vmatprep.subr.bf16.mxu0 0
      %956 = vmatpush1.bf16.msra.mxu0 0
      %957 = vmatprep.subr.bf16.mxu0 0
      %958 = vmatpush1.bf16.msra.mxu0 0
      %959 = vmatprep.subr.bf16.mxu0 0
      %960 = vmatpush1.bf16.msra.mxu0 0
      %961 = vmatprep.subr.bf16.mxu0 0
      %962 = vmatpush1.bf16.msra.mxu0 0
      %963 = vmatprep.subr.bf16.mxu0 0
      %964 = vmatpush1.bf16.msra.mxu0 0
      %965 = vmatprep.subr.bf16.mxu0 0
      %966 = vmatpush1.bf16.msra.mxu0 0
      %967 = vmatprep.subr.bf16.mxu0 0
      %968 = vmatpush1.bf16.msra.mxu0 0
      %969 = vmatprep.subr.bf16.mxu0 0
      %970 = vmatpush1.bf16.msra.mxu0 0
      %971 = vmatprep.subr.bf16.mxu0 0
      %972 = vmatpush1.bf16.msra.mxu0 0
      %973 = vmatprep.subr.bf16.mxu0 0
      %974 = vmatpush1.bf16.msra.mxu0 0
      %975 = vmatprep.subr.bf16.mxu0 0
      %976 = vmatpush1.bf16.msra.mxu0 0
      %977 = vmatprep.subr.bf16.mxu0 0
      %978 = vmatpush1.bf16.msra.mxu0 0
      %979 = vmatprep.subr.bf16.mxu0 0
      %980 = vmatpush1.bf16.msra.mxu0 0
      %981 = vmatprep.subr.bf16.mxu0 0
      %982 = vmatpush1.bf16.msra.mxu0 0
      %983 = vmatprep.mubr.bf16.mxu0 0
      %984 = vmatmul.mubr.bf16.gmra.mrb[0].mxu0 %v943
      %v985 = vpop.f32.mrb[0].mxu0
      %v986 = vadd.f32 %v929, %v985
      %v987 = vpop.f32.mrb[0].mxu0
      %v988 = vadd.f32 %v931, %v987
      %v989 = vpop.f32.mrb[0].mxu0
      %v990 = vadd.f32 %v933, %v989
      %v991 = vpop.f32.mrb[0].mxu0
      %v992 = vadd.f32 %v935, %v991
      %993 = vdwg.mxu0
      %v994 = vld [vmem:[%s9] sm:$0xff]
      %v995 = vld [vmem:[%s9 + $0x8] sm:$0xff]
      %997 = vset.pattern.permute.xlu0 0
      %998 = vperm.xlu0 %997, %v994
      %v999 = vpop.permute.xlu0 %998
      %1002 = vset.pattern.permute.xlu0 0
      %1003 = vperm.xlu0 %1002, %v995
      %v1004 = vpop.permute.xlu0 %1003
      %v1006 = vadd.f32 %v986, %v999
      %v1007 = vadd.f32 %v988, %v999
      %v1008 = vadd.f32 %v990, %v1004
      %v1009 = vadd.f32 %v992, %v1004
      %v1010 = vsub.f32 0.0, %v1006
      %v1011 = vsub.f32 0.0, %v1007
      %v1012 = vsub.f32 0.0, %v1008
      %v1013 = vsub.f32 0.0, %v1009
      %v1014 = vmul.f32 %v1010, 1.442695
      %v1015 = vpow.pop %v1014
      %v1016 = vmul.f32 %v1011, 1.442695
      %v1017 = vpow.pop %v1016
      %v1018 = vmul.f32 %v1012, 1.442695
      %v1019 = vpow.pop %v1018
      %v1020 = vmul.f32 %v1013, 1.442695
      %v1021 = vpow.pop %v1020
      %v1022 = vadd.f32 %v1015, 1.0
      %v1023 = vadd.f32 %v1017, 1.0
      %v1024 = vadd.f32 %v1019, 1.0
      %v1025 = vadd.f32 %v1021, 1.0
      %v1026 = vrcp.pop %v1022
      %v1027 = vrcp.pop %v1023
      %v1028 = vrcp.pop %v1024
      %v1029 = vrcp.pop %v1025
      %v1030 = vmul.f32 %v1006, %v1026
      %v1031 = vmul.f32 %v1007, %v1027
      %v1032 = vmul.f32 %v1008, %v1028
      %v1033 = vmul.f32 %v1009, %v1029
      %1034 = vst [vmem:[%s386] sm:$0xff] %v1030
      %1035 = vst [vmem:[%s386 + $0x8] sm:$0xff] %v1031
      %1036 = vst [vmem:[%s386 + $0x10] sm:$0xff] %v1032
      %1037 = vst [vmem:[%s386 + $0x18] sm:$0xff] %v1033
      %p1038 = scmp.lt.s32.totalorder %s22, 1
      %s1039 = scalar_select %p1038, %s22, 1
      %s1040 = smul.addr %s1039, 4
      %s1041 = smul.addr %s1040, 8
      %s1042 = scalar_lea.vmem %s11, %s1041
      // Predicated region
      $region65: #{csp_layer_forward.1} parent=63 // pred_check
        %p1043 = pneg %p276
      $region66: #{csp_layer_forward.1} parent=63 // pred_check_branch
        %1045 = sbr.rel (%p1043) target = $region68
      $region67: #{csp_layer_forward.1} parent=63 // pred_region
        _
      $region68: #{csp_layer_forward.1} parent=63 // pred_fallthru
        _
    $region64: #{csp_layer_forward.1} parent=5 // pred_fallthru
      _
    %p1046 = scmp.le.s32.totalorder 2, %s17
    // Predicated region
    $region69: #{csp_layer_forward.1} parent=5 // pred_check
      %p1047 = pneg %p1046
    $region70: #{csp_layer_forward.1} parent=5 // pred_check_branch
      %1049 = sbr.rel (%p1047) target = $region72
    $region71: #{csp_layer_forward.1} parent=5 // pred_region
      %s1050 = ssub.s32 %s17, 2
      // Predicated region
      $region73: #{csp_layer_forward.1} parent=71 // pred_check
        %p1051 = pneg %p282
      $region74: #{csp_layer_forward.1} parent=71 // pred_check_branch
        %1053 = sbr.rel (%p1051) target = $region76
      $region75: #{csp_layer_forward.1} parent=71 // pred_region
        %p1054 = scmp.lt.s32.totalorder %s23, 1
        %s1055 = scalar_select %p1054, %s23, 1
        %s1056 = smul.addr %s1055, 4
        %s1057 = smul.addr %s1056, 8
        %s1058 = scalar_lea.vmem %s11, %s1057
      $region76: #{csp_layer_forward.1} parent=71 // pred_fallthru
        _
    $region72: #{csp_layer_forward.1} parent=5 // pred_fallthru
      _
  $region6: #{csp_layer_forward.1} parent=0 // loop_footer
    %s21 = sadd.s32 1, %s17
  $region7: #{csp_layer_forward.1} parent=0 // loop_footer_branch
    %16 = sbr.rel target = $region3
  $region8: #{csp_layer_forward.1} parent=0 // loop_exit
    _

</llo_original>
